<compile_context>
chip_gen: v5e
topology: v5e:2x2
jax: 0.10.0
libtpu: 0.0.40
codegen_flags: <defaults>
</compile_context>

<pallas_src>
import functools

import jax
import jax.numpy as jnp
import numpy as np
from jax.experimental import pallas as pl
from jax.experimental.pallas import tpu as pltpu


# ----------------------------------------------------------------------------
# Pallas kernels
# ----------------------------------------------------------------------------
def _conv3x3_s2_kernel(xm_ref, xh_ref, ws_ref, w0_ref, b_ref, o_ref, *, TH, Wo, C):
    """3x3 / stride-2 / pad-1 conv for one (batch, output-row tile).

    Folded (unpadded) layout: xf[p, s, bw, t*C + c] == x[2p + s, 2bw + t, c].
    Output row R uses input rows 2R-1 (kh=0), 2R (kh=1), 2R+1 (kh=2); output
    col j uses input cols 2j-1 (kw=0), 2j (kw=1), 2j+1 (kw=2).

      xm_ref: (TH, 2, Wo, 2C)  row pairs [r0, r0+TH)
      xh_ref: (1,  2, Wo, 2C)  row pair r0-1 (clamped; gated off on tile 0)
      ws_ref: (3, 2C, Cout)    per-kh fused weights for the kw=1,2 lane slab
      w0_ref: (3, C, Cout)     per-kh weights for the shifted kw=0 tap
      b_ref : (1, Cout)        float32 bias
      o_ref : (TH, Wo, Cout)
    """
    f32 = jnp.float32
    Cout = o_ref.shape[-1]
    dt = xm_ref.dtype
    M = TH * Wo

    x = xm_ref[...]                                   # (TH, 2, Wo, 2C)
    hi = x[..., C:2 * C]                              # odd input cols (lanes C:2C)
    if Wo > 1:
        # kw=0 operand: odd cols shifted right by one output col, zero at j=0.
        # TODO(synk): pltpu.roll (XLU) could replace this sublane concat.
        sh = jnp.concatenate(
            [jnp.zeros((TH, 2, 1, C), dt), hi[:, :, :Wo - 1, :]], axis=2)
    else:
        sh = jnp.zeros_like(hi)

    # kh=1 (input row 2R) and kh=2 (2R+1): all TH output rows, main block only.
    acc = jnp.dot(x[:, 0].reshape(M, 2 * C), ws_ref[1], preferred_element_type=f32)
    acc += jnp.dot(sh[:, 0].reshape(M, C), w0_ref[1], preferred_element_type=f32)
    acc += jnp.dot(x[:, 1].reshape(M, 2 * C), ws_ref[2], preferred_element_type=f32)
    acc += jnp.dot(sh[:, 1].reshape(M, C), w0_ref[2], preferred_element_type=f32)
    acc = acc.reshape(TH, Wo, Cout)
    bias = b_ref[...]                                 # (1, Cout) f32, broadcasts

    # kh=0 (input row 2R-1), output rows 1..TH-1: slot-1 rows of pairs 0..TH-2.
    if TH > 1:
        M1 = (TH - 1) * Wo
        c0 = jnp.dot(x[:TH - 1, 1].reshape(M1, 2 * C), ws_ref[0],
                     preferred_element_type=f32)
        c0 += jnp.dot(sh[:TH - 1, 1].reshape(M1, C), w0_ref[0],
                      preferred_element_type=f32)
        o_ref[1:TH] = (acc[1:TH] + c0.reshape(TH - 1, Wo, Cout)
                       + bias).astype(o_ref.dtype)

    # kh=0, output row 0: slot-1 row of the top-halo pair; it is the zero
    # padding (gate = 0) when this is the first row tile of the image.
    xh = xh_ref[0, 1]                                 # (Wo, 2C)
    if Wo > 1:
        shh = jnp.concatenate(
            [jnp.zeros((1, C), dt), xh[:Wo - 1, C:2 * C]], axis=0)
    else:
        shh = jnp.zeros((Wo, C), dt)
    gate = (pl.program_id(1) > 0).astype(f32)
    cf = jnp.dot(xh, ws_ref[0], preferred_element_type=f32)
    cf += jnp.dot(shh, w0_ref[0], preferred_element_type=f32)
    o_ref[0:1] = (acc[0:1] + (cf * gate).reshape(1, Wo, Cout)
                  + bias).astype(o_ref.dtype)


def _avgpool2x2_kernel(x_ref, o_ref, *, C):
    """2x2 / stride-2 average pool for one (batch, output-row tile).

    x_ref: (TH, 2, Wo, 2C) folded input; o_ref: (TH, Wo, C).
    """
    x = x_ref[...]
    s01 = x[:, 0].astype(jnp.float32) + x[:, 1].astype(jnp.float32)  # full 2C slab
    s = s01[..., :C] + s01[..., C:]                                   # one lane-halving add
    o_ref[...] = (s * 0.25).astype(o_ref.dtype)


# ----------------------------------------------------------------------------
# Tiling / VMEM helpers
# ----------------------------------------------------------------------------
def _largest_divisor_leq(n, k):
    k = max(1, min(n, k))
    while n % k:
        k -= 1
    return k


def _vmem_cap_bytes():
    try:
        return int(pltpu.get_tpu_info().vmem_capacity_bytes)
    except Exception:
        return 64 << 20                      # v7x-safe fallback


def _pick_tile_h(Ho, Wo, C, itemsize, n_batch, target_block_bytes, m_target=None):
    th = Ho
    if m_target is not None:                 # flattened matmul M target
        th = min(th, max(1, m_target // max(Wo, 1)))
    row_bytes = 2 * Wo * 2 * C * itemsize    # folded input bytes per output row
    th = min(th, max(1, target_block_bytes // max(row_bytes, 1)))
    th = _largest_divisor_leq(Ho, th)
    # v7x has 2 TensorCores: keep >= 2 grid programs when the shape allows it.
    if n_batch * (Ho // th) < 2 and Ho >= 2:
        th = _largest_divisor_leq(Ho, max(1, th // 2))
    return th


# ----------------------------------------------------------------------------
# Wrappers
# ----------------------------------------------------------------------------
@jax.jit
def downsample_conv(x_nchw, w_hwio, bias):
    N, C, H, W = x_nchw.shape
    assert H % 2 == 0 and W % 2 == 0, "even spatial dims required (see TODO)"
    Ho, Wo = H // 2, W // 2

    # NCHW -> NHWC is the only wrapper-side HBM pass (PyTorch semantics force
    # NCHW at the module boundary).  No jnp.pad: border handled in-kernel.
    x = jnp.transpose(x_nchw, (0, 2, 3, 1))
    xf = x.reshape(N, Ho, 2, Wo, 2 * C)                 # free stride-2 fold
    dt = x.dtype

    w = w_hwio.astype(dt)                               # native-dtype MXU operands
    w_slab = w[:, 1:3].reshape(3, 2 * C, C)             # kw=1,2 fused (K = 2C)
    w_sh = w[:, 0]                                      # (3, C, C)  kw=0 tap
    b2 = bias.reshape(1, C).astype(jnp.float32)         # bias added in f32

    itemsize = x.dtype.itemsize
    TH = _pick_tile_h(Ho, Wo, C, itemsize, N, 8 << 20, m_target=1024)
    n_h = Ho // TH

    blk_main = TH * 2 * Wo * 2 * C * itemsize
    blk_halo = 2 * Wo * 2 * C * itemsize
    blk_out = TH * Wo * C * itemsize
    w_bytes = (3 * 2 * C * C + 3 * C * C) * itemsize + 4 * C
    vmem_est = (2 * (blk_main + blk_halo + blk_out)     # double-buffered pipeline
                + 2 * w_bytes                           # grid-invariant weights
                + 4 * TH * Wo * C * 4)                  # f32 acc + temporaries
    cap = _vmem_cap_bytes()
    vmem_limit = int(max(32 << 20, min((cap * 3) // 4, 2 * vmem_est)))

    kernel = functools.partial(_conv3x3_s2_kernel, TH=TH, Wo=Wo, C=C)
    out = pl.pallas_call(
        kernel,
        out_shape=jax.ShapeDtypeStruct((N, Ho, Wo, C), dt),
        grid=(N, n_h),
        in_specs=[
            # main row-pair block for this output-row tile
            pl.BlockSpec((None, TH, 2, Wo, 2 * C),
                         lambda n, i: (n, i, 0, 0, 0)),
            # 1-row-pair *top* halo (pair r0-1; clamped & gated for tile 0)
            pl.BlockSpec((None, 1, 2, Wo, 2 * C),
                         lambda n, i: (n, jnp.maximum(i * TH - 1, 0), 0, 0, 0)),
            # grid-invariant weights / bias (re-fetch elided by the pipeline)
            pl.BlockSpec((3, 2 * C, C), lambda n, i: (0, 0, 0)),
            pl.BlockSpec((3, C, C), lambda n, i: (0, 0, 0)),
            pl.BlockSpec((1, C), lambda n, i: (0, 0)),
        ],
        out_specs=pl.BlockSpec((None, TH, Wo, C), lambda n, i: (n, i, 0, 0)),
        compiler_params=pltpu.CompilerParams(
            dimension_semantics=("parallel", "parallel"),
            vmem_limit_bytes=vmem_limit,
        ),
    )(xf, xf, w_slab, w_sh, b2)
    return jnp.transpose(out, (0, 3, 1, 2))             # NHWC -> NCHW


@jax.jit
def downsample_avgpool(x_nchw):
    N, C, H, W = x_nchw.shape
    assert H % 2 == 0 and W % 2 == 0, "even spatial dims required (see TODO)"
    Ho, Wo = H // 2, W // 2

    x = jnp.transpose(x_nchw, (0, 2, 3, 1))              # NCHW -> NHWC
    xf = x.reshape(N, Ho, 2, Wo, 2 * C)                  # free reshape

    itemsize = x.dtype.itemsize
    TH = _pick_tile_h(Ho, Wo, C, itemsize, N, 8 << 20)
    n_h = Ho // TH

    blk_in = TH * 2 * Wo * 2 * C * itemsize
    blk_out = TH * Wo * C * itemsize
    cap = _vmem_cap_bytes()
    vmem_est = 2 * (blk_in + blk_out) + TH * Wo * 2 * C * 4
    vmem_limit = int(max(32 << 20, min((cap * 3) // 4, 2 * vmem_est)))

    out = pl.pallas_call(
        functools.partial(_avgpool2x2_kernel, C=C),
        out_shape=jax.ShapeDtypeStruct((N, Ho, Wo, C), x.dtype),
        grid=(N, n_h),
        in_specs=[pl.BlockSpec((None, TH, 2, Wo, 2 * C),
                               lambda n, i: (n, i, 0, 0, 0))],
        out_specs=pl.BlockSpec((None, TH, Wo, C), lambda n, i: (n, i, 0, 0)),
        compiler_params=pltpu.CompilerParams(
            dimension_semantics=("parallel", "parallel"),
            vmem_limit_bytes=vmem_limit,
        ),
    )(xf)
    return jnp.transpose(out, (0, 3, 1, 2))              # NHWC -> NCHW


class Downsample:
    """JAX/Pallas port of improved_diffusion Downsample (dims=2)."""

    def __init__(self, channels, use_conv, dims=2, key=None):
        assert dims == 2, "only dims=2 implemented"  # TODO(synk): dims=1/3
        self.channels = channels
        self.use_conv = use_conv
        self.dims = dims
        if use_conv:
            key = jax.random.PRNGKey(0) if key is None else key
            kw, kb = jax.random.split(key)
            fan_in = channels * 3 * 3
            bound = 1.0 / np.sqrt(fan_in)            # PyTorch Conv2d default init
            self.w = jax.random.uniform(kw, (3, 3, channels, channels),
                                        jnp.float32, -bound, bound)
            self.b = jax.random.uniform(kb, (channels,), jnp.float32, -bound, bound)

    def __call__(self, x_nchw):
        assert x_nchw.shape[1] == self.channels
        if self.use_conv:
            return downsample_conv(x_nchw, self.w, self.b)
        return downsample_avgpool(x_nchw)


# ----------------------------------------------------------------------------
if __name__ == "__main__":
    def _check(N, C, H, W, key):
        kx, kp = jax.random.split(key)
        x = jax.random.normal(kx, (N, C, H, W), jnp.float32)

        # --- use_conv=True branch -------------------------------------------
        mod_conv = Downsample(C, use_conv=True, dims=2, key=kp)
        y_conv = jax.block_until_ready(mod_conv(x))
        assert y_conv.shape == (N, C, H // 2, W // 2)
        ref = jax.lax.conv_general_dilated(
            jnp.transpose(x, (0, 2, 3, 1)), mod_conv.w,
            window_strides=(2, 2), padding=((1, 1), (1, 1)),
            dimension_numbers=("NHWC", "HWIO", "NHWC")) + mod_conv.b
        ref = jnp.transpose(ref, (0, 3, 1, 2))
        np.testing.assert_allclose(np.asarray(y_conv), np.asarray(ref),
                                   rtol=1e-4, atol=1e-4)

        # --- use_conv=False branch (avg pool) --------------------------------
        mod_pool = Downsample(C, use_conv=False, dims=2)
        y_pool = jax.block_until_ready(mod_pool(x))
        ref_pool = x.reshape(N, C, H // 2, 2, W // 2, 2).mean(axis=(3, 5))
        np.testing.assert_allclose(np.asarray(y_pool), np.asarray(ref_pool),
                                   rtol=1e-5, atol=1e-5)

    key = jax.random.PRNGKey(0)
    k1, k2 = jax.random.split(key)
    _check(2, 4, 16, 16, k1)   # small spec shape (single row tile per batch)
    _check(1, 8, 64, 64, k2)   # multi-tile: exercises the top halo + gate path
    print("KERNEL_OK")
</pallas_src>

<mosaic_0001>
module attributes {stable_mosaic.version = 11 : i64} {
  func.func @_conv3x3_s2_kernel(%arg0: i32, %arg1: i32, %arg2: memref<1x8x2x8x8xf32, #tpu.memory_space<vmem>>, %arg3: memref<1x1x2x8x8xf32, #tpu.memory_space<vmem>>, %arg4: memref<3x8x4xf32, #tpu.memory_space<vmem>>, %arg5: memref<3x4x4xf32, #tpu.memory_space<vmem>>, %arg6: memref<1x4xf32, #tpu.memory_space<vmem>>, %arg7: memref<1x8x8x4xf32, #tpu.memory_space<vmem>>) attributes {dimension_semantics = [#tpu.dimension_semantics<parallel>, #tpu.dimension_semantics<parallel>], iteration_bounds = array<i64: 2, 1>, scalar_prefetch = 0 : i64, scratch_operands = 0 : i64, tpu.core_type = #tpu.core_type<tc>, window_params = [{transform_indices = @transform_0, window_bounds = array<i64: 1, 8, 2, 8, 8>}, {transform_indices = @transform_1, window_bounds = array<i64: 1, 1, 2, 8, 8>}, {pipeline_mode = #tpu.pipeline_mode<synchronous>, transform_indices = @transform_2, window_bounds = array<i64: 3, 8, 4>}, {pipeline_mode = #tpu.pipeline_mode<synchronous>, transform_indices = @transform_3, window_bounds = array<i64: 3, 4, 4>}, {pipeline_mode = #tpu.pipeline_mode<synchronous>, transform_indices = @transform_4, window_bounds = array<i64: 1, 4>}, {transform_indices = @transform_5, window_bounds = array<i64: 1, 8, 8, 4>}]} {
    %c0 = arith.constant 0 : index
    %c0_0 = arith.constant 0 : index
    %c0_1 = arith.constant 0 : index
    %c0_2 = arith.constant 0 : index
    %c0_3 = arith.constant 0 : index
    %0 = vector.load %arg2[%c0, %c0_0, %c0_1, %c0_2, %c0_3] : memref<1x8x2x8x8xf32, #tpu.memory_space<vmem>>, vector<1x8x2x8x8xf32>
    %1 = vector.shape_cast %0 : vector<1x8x2x8x8xf32> to vector<8x2x8x8xf32>
    %2 = vector.extract_strided_slice %1 {offsets = [0, 0, 0, 4], sizes = [8, 2, 8, 4], strides = [1, 1, 1, 1]} : vector<8x2x8x8xf32> to vector<8x2x8x4xf32>
    %cst = arith.constant 0.000000e+00 : f32
    %3 = vector.broadcast %cst : f32 to vector<8x2x1x4xf32>
    %4 = vector.extract_strided_slice %2 {offsets = [0, 0, 0, 0], sizes = [8, 2, 7, 4], strides = [1, 1, 1, 1]} : vector<8x2x8x4xf32> to vector<8x2x7x4xf32>
    %5 = tpu.concatenate %3, %4 in 2 : vector<8x2x1x4xf32>, vector<8x2x7x4xf32> -> vector<8x2x8x4xf32>
    %6 = vector.extract_strided_slice %1 {offsets = [0, 0, 0, 0], sizes = [8, 1, 8, 8], strides = [1, 1, 1, 1]} : vector<8x2x8x8xf32> to vector<8x1x8x8xf32>
    %7 = vector.shape_cast %6 : vector<8x1x8x8xf32> to vector<8x8x8xf32>
    %8 = vector.shape_cast %7 : vector<8x8x8xf32> to vector<64x8xf32>
    %c1 = arith.constant 1 : index
    %c0_4 = arith.constant 0 : index
    %c0_5 = arith.constant 0 : index
    %9 = vector.load %arg4[%c1, %c0_4, %c0_5] : memref<3x8x4xf32, #tpu.memory_space<vmem>>, vector<1x8x4xf32>
    %10 = vector.shape_cast %9 : vector<1x8x4xf32> to vector<8x4xf32>
    %cst_6 = arith.constant dense<0.000000e+00> : vector<64x4xf32>
    %11 = tpu.matmul %8, %10, %cst_6 {dimension_numbers = #tpu.dot_dimension_numbers<[1], [0], [0], [1], [0, 0, 1, 1], [], []>} : vector<64x8xf32>, vector<8x4xf32>, vector<64x4xf32> -> vector<64x4xf32>
    %12 = vector.extract_strided_slice %5 {offsets = [0, 0, 0, 0], sizes = [8, 1, 8, 4], strides = [1, 1, 1, 1]} : vector<8x2x8x4xf32> to vector<8x1x8x4xf32>
    %13 = vector.shape_cast %12 : vector<8x1x8x4xf32> to vector<8x8x4xf32>
    %14 = vector.shape_cast %13 : vector<8x8x4xf32> to vector<64x4xf32>
    %c1_7 = arith.constant 1 : index
    %c0_8 = arith.constant 0 : index
    %c0_9 = arith.constant 0 : index
    %15 = vector.load %arg5[%c1_7, %c0_8, %c0_9] : memref<3x4x4xf32, #tpu.memory_space<vmem>>, vector<1x4x4xf32>
    %16 = vector.shape_cast %15 : vector<1x4x4xf32> to vector<4x4xf32>
    %cst_10 = arith.constant dense<0.000000e+00> : vector<64x4xf32>
    %17 = tpu.matmul %14, %16, %cst_10 {dimension_numbers = #tpu.dot_dimension_numbers<[1], [0], [0], [1], [0, 0, 1, 1], [], []>} : vector<64x4xf32>, vector<4x4xf32>, vector<64x4xf32> -> vector<64x4xf32>
    %18 = arith.addf %11, %17 : vector<64x4xf32>
    %19 = vector.extract_strided_slice %1 {offsets = [0, 1, 0, 0], sizes = [8, 1, 8, 8], strides = [1, 1, 1, 1]} : vector<8x2x8x8xf32> to vector<8x1x8x8xf32>
    %20 = vector.shape_cast %19 : vector<8x1x8x8xf32> to vector<8x8x8xf32>
    %21 = vector.shape_cast %20 : vector<8x8x8xf32> to vector<64x8xf32>
    %c2 = arith.constant 2 : index
    %c0_11 = arith.constant 0 : index
    %c0_12 = arith.constant 0 : index
    %22 = vector.load %arg4[%c2, %c0_11, %c0_12] : memref<3x8x4xf32, #tpu.memory_space<vmem>>, vector<1x8x4xf32>
    %23 = vector.shape_cast %22 : vector<1x8x4xf32> to vector<8x4xf32>
    %cst_13 = arith.constant dense<0.000000e+00> : vector<64x4xf32>
    %24 = tpu.matmul %21, %23, %cst_13 {dimension_numbers = #tpu.dot_dimension_numbers<[1], [0], [0], [1], [0, 0, 1, 1], [], []>} : vector<64x8xf32>, vector<8x4xf32>, vector<64x4xf32> -> vector<64x4xf32>
    %25 = arith.addf %18, %24 : vector<64x4xf32>
    %26 = vector.extract_strided_slice %5 {offsets = [0, 1, 0, 0], sizes = [8, 1, 8, 4], strides = [1, 1, 1, 1]} : vector<8x2x8x4xf32> to vector<8x1x8x4xf32>
    %27 = vector.shape_cast %26 : vector<8x1x8x4xf32> to vector<8x8x4xf32>
    %28 = vector.shape_cast %27 : vector<8x8x4xf32> to vector<64x4xf32>
    %c2_14 = arith.constant 2 : index
    %c0_15 = arith.constant 0 : index
    %c0_16 = arith.constant 0 : index
    %29 = vector.load %arg5[%c2_14, %c0_15, %c0_16] : memref<3x4x4xf32, #tpu.memory_space<vmem>>, vector<1x4x4xf32>
    %30 = vector.shape_cast %29 : vector<1x4x4xf32> to vector<4x4xf32>
    %cst_17 = arith.constant dense<0.000000e+00> : vector<64x4xf32>
    %31 = tpu.matmul %28, %30, %cst_17 {dimension_numbers = #tpu.dot_dimension_numbers<[1], [0], [0], [1], [0, 0, 1, 1], [], []>} : vector<64x4xf32>, vector<4x4xf32>, vector<64x4xf32> -> vector<64x4xf32>
    %32 = arith.addf %25, %31 : vector<64x4xf32>
    %33 = vector.shape_cast %32 : vector<64x4xf32> to vector<8x8x4xf32>
    %c0_18 = arith.constant 0 : index
    %c0_19 = arith.constant 0 : index
    %34 = vector.load %arg6[%c0_18, %c0_19] : memref<1x4xf32, #tpu.memory_space<vmem>>, vector<1x4xf32>
    %35 = vector.extract_strided_slice %1 {offsets = [0, 1, 0, 0], sizes = [7, 1, 8, 8], strides = [1, 1, 1, 1]} : vector<8x2x8x8xf32> to vector<7x1x8x8xf32>
    %36 = vector.shape_cast %35 : vector<7x1x8x8xf32> to vector<7x8x8xf32>
    %37 = vector.shape_cast %36 : vector<7x8x8xf32> to vector<56x8xf32>
    %c0_20 = arith.constant 0 : index
    %c0_21 = arith.constant 0 : index
    %c0_22 = arith.constant 0 : index
    %38 = vector.load %arg4[%c0_20, %c0_21, %c0_22] : memref<3x8x4xf32, #tpu.memory_space<vmem>>, vector<1x8x4xf32>
    %39 = vector.shape_cast %38 : vector<1x8x4xf32> to vector<8x4xf32>
    %cst_23 = arith.constant dense<0.000000e+00> : vector<56x4xf32>
    %40 = tpu.matmul %37, %39, %cst_23 {dimension_numbers = #tpu.dot_dimension_numbers<[1], [0], [0], [1], [0, 0, 1, 1], [], []>} : vector<56x8xf32>, vector<8x4xf32>, vector<56x4xf32> -> vector<56x4xf32>
    %41 = vector.extract_strided_slice %5 {offsets = [0, 1, 0, 0], sizes = [7, 1, 8, 4], strides = [1, 1, 1, 1]} : vector<8x2x8x4xf32> to vector<7x1x8x4xf32>
    %42 = vector.shape_cast %41 : vector<7x1x8x4xf32> to vector<7x8x4xf32>
    %43 = vector.shape_cast %42 : vector<7x8x4xf32> to vector<56x4xf32>
    %c0_24 = arith.constant 0 : index
    %c0_25 = arith.constant 0 : index
    %c0_26 = arith.constant 0 : index
    %44 = vector.load %arg5[%c0_24, %c0_25, %c0_26] : memref<3x4x4xf32, #tpu.memory_space<vmem>>, vector<1x4x4xf32>
    %45 = vector.shape_cast %44 : vector<1x4x4xf32> to vector<4x4xf32>
    %cst_27 = arith.constant dense<0.000000e+00> : vector<56x4xf32>
    %46 = tpu.matmul %43, %45, %cst_27 {dimension_numbers = #tpu.dot_dimension_numbers<[1], [0], [0], [1], [0, 0, 1, 1], [], []>} : vector<56x4xf32>, vector<4x4xf32>, vector<56x4xf32> -> vector<56x4xf32>
    %47 = arith.addf %40, %46 : vector<56x4xf32>
    %48 = vector.extract_strided_slice %33 {offsets = [1, 0, 0], sizes = [7, 8, 4], strides = [1, 1, 1]} : vector<8x8x4xf32> to vector<7x8x4xf32>
    %49 = vector.shape_cast %47 : vector<56x4xf32> to vector<7x8x4xf32>
    %50 = arith.addf %48, %49 : vector<7x8x4xf32>
    %51 = vector.shape_cast %34 : vector<1x4xf32> to vector<1x1x4xf32>
    %52 = vector.broadcast %51 : vector<1x1x4xf32> to vector<7x8x4xf32>
    %53 = arith.addf %50, %52 : vector<7x8x4xf32>
    %c0_28 = arith.constant 0 : index
    %c1_29 = arith.constant 1 : index
    %c0_30 = arith.constant 0 : index
    %c0_31 = arith.constant 0 : index
    %54 = vector.load %arg7[%c0_28, %c1_29, %c0_30, %c0_31] : memref<1x8x8x4xf32, #tpu.memory_space<vmem>>, vector<1x7x8x4xf32>
    %55 = vector.shape_cast %54 : vector<1x7x8x4xf32> to vector<7x8x4xf32>
    %56 = vector.shape_cast %53 : vector<7x8x4xf32> to vector<1x7x8x4xf32>
    tpu.vector_store %arg7[%c0_28, %c1_29, %c0_30, %c0_31], %56 {strides = array<i32>} : memref<1x8x8x4xf32, #tpu.memory_space<vmem>>, vector<1x7x8x4xf32>,
    %c0_32 = arith.constant 0 : index
    %c0_33 = arith.constant 0 : index
    %c1_34 = arith.constant 1 : index
    %c0_35 = arith.constant 0 : index
    %c0_36 = arith.constant 0 : index
    %57 = vector.load %arg3[%c0_32, %c0_33, %c1_34, %c0_35, %c0_36] : memref<1x1x2x8x8xf32, #tpu.memory_space<vmem>>, vector<1x1x1x8x8xf32>
    %58 = vector.shape_cast %57 : vector<1x1x1x8x8xf32> to vector<8x8xf32>
    %cst_37 = arith.constant 0.000000e+00 : f32
    %59 = vector.broadcast %cst_37 : f32 to vector<1x4xf32>
    %60 = vector.extract_strided_slice %58 {offsets = [0, 4], sizes = [7, 4], strides = [1, 1]} : vector<8x8xf32> to vector<7x4xf32>
    %61 = tpu.concatenate %59, %60 in 0 : vector<1x4xf32>, vector<7x4xf32> -> vector<8x4xf32>
    %c0_i32 = arith.constant 0 : i32
    %62 = arith.cmpi sgt, %arg1, %c0_i32 : i32
    %63 = arith.extui %62 : i1 to i32
    %64 = arith.sitofp %63 : i32 to f32
    %c0_38 = arith.constant 0 : index
    %c0_39 = arith.constant 0 : index
    %c0_40 = arith.constant 0 : index
    %65 = vector.load %arg4[%c0_38, %c0_39, %c0_40] : memref<3x8x4xf32, #tpu.memory_space<vmem>>, vector<1x8x4xf32>
    %66 = vector.shape_cast %65 : vector<1x8x4xf32> to vector<8x4xf32>
    %cst_41 = arith.constant dense<0.000000e+00> : vector<8x4xf32>
    %67 = tpu.matmul %58, %66, %cst_41 {dimension_numbers = #tpu.dot_dimension_numbers<[1], [0], [0], [1], [0, 0, 1, 1], [], []>} : vector<8x8xf32>, vector<8x4xf32>, vector<8x4xf32> -> vector<8x4xf32>
    %c0_42 = arith.constant 0 : index
    %c0_43 = arith.constant 0 : index
    %c0_44 = arith.constant 0 : index
    %68 = vector.load %arg5[%c0_42, %c0_43, %c0_44] : memref<3x4x4xf32, #tpu.memory_space<vmem>>, vector<1x4x4xf32>
    %69 = vector.shape_cast %68 : vector<1x4x4xf32> to vector<4x4xf32>
    %cst_45 = arith.constant dense<0.000000e+00> : vector<8x4xf32>
    %70 = tpu.matmul %61, %69, %cst_45 {dimension_numbers = #tpu.dot_dimension_numbers<[1], [0], [0], [1], [0, 0, 1, 1], [], []>} : vector<8x4xf32>, vector<4x4xf32>, vector<8x4xf32> -> vector<8x4xf32>
    %71 = arith.addf %67, %70 : vector<8x4xf32>
    %72 = vector.extract_strided_slice %33 {offsets = [0, 0, 0], sizes = [1, 8, 4], strides = [1, 1, 1]} : vector<8x8x4xf32> to vector<1x8x4xf32>
    %73 = vector.broadcast %64 : f32 to vector<8x4xf32>
    %74 = arith.mulf %71, %73 : vector<8x4xf32>
    %75 = vector.shape_cast %74 : vector<8x4xf32> to vector<1x8x4xf32>
    %76 = arith.addf %72, %75 : vector<1x8x4xf32>
    %77 = vector.shape_cast %34 : vector<1x4xf32> to vector<1x1x4xf32>
    %78 = vector.broadcast %77 : vector<1x1x4xf32> to vector<1x8x4xf32>
    %79 = arith.addf %76, %78 : vector<1x8x4xf32>
    %c0_46 = arith.constant 0 : index
    %c0_47 = arith.constant 0 : index
    %c0_48 = arith.constant 0 : index
    %c0_49 = arith.constant 0 : index
    %80 = vector.load %arg7[%c0_46, %c0_47, %c0_48, %c0_49] : memref<1x8x8x4xf32, #tpu.memory_space<vmem>>, vector<1x1x8x4xf32>
    %81 = vector.shape_cast %80 : vector<1x1x8x4xf32> to vector<1x8x4xf32>
    %82 = vector.shape_cast %79 : vector<1x8x4xf32> to vector<1x1x8x4xf32>
    tpu.vector_store %arg7[%c0_46, %c0_47, %c0_48, %c0_49], %82 {strides = array<i32>} : memref<1x8x8x4xf32, #tpu.memory_space<vmem>>, vector<1x1x8x4xf32>,
    return
  }
  func.func @transform_0(%arg0: i32, %arg1: i32) -> (i32, i32, i32, i32, i32) {
    %c0_i32 = arith.constant 0 : i32
    %c0_i32_0 = arith.constant 0 : i32
    %c0_i32_1 = arith.constant 0 : i32
    %c0_i32_2 = arith.constant 0 : i32
    return %arg0, %arg1, %c0_i32, %c0_i32_0, %c0_i32_1 : i32, i32, i32, i32, i32
  }
  func.func @transform_1(%arg0: i32, %arg1: i32) -> (i32, i32, i32, i32, i32) {
    %c8_i32 = arith.constant 8 : i32
    %0 = arith.muli %arg1, %c8_i32 : i32
    %c1_i32 = arith.constant 1 : i32
    %1 = arith.subi %0, %c1_i32 : i32
    %c0_i32 = arith.constant 0 : i32
    %2 = arith.maxsi %1, %c0_i32 : i32
    %c0_i32_0 = arith.constant 0 : i32
    %c0_i32_1 = arith.constant 0 : i32
    %c0_i32_2 = arith.constant 0 : i32
    %c0_i32_3 = arith.constant 0 : i32
    return %arg0, %2, %c0_i32_0, %c0_i32_1, %c0_i32_2 : i32, i32, i32, i32, i32
  }
  func.func @transform_2(%arg0: i32, %arg1: i32) -> (i32, i32, i32) {
    %c0_i32 = arith.constant 0 : i32
    %c0_i32_0 = arith.constant 0 : i32
    %c0_i32_1 = arith.constant 0 : i32
    %c0_i32_2 = arith.constant 0 : i32
    return %c0_i32, %c0_i32_0, %c0_i32_1 : i32, i32, i32
  }
  func.func @transform_3(%arg0: i32, %arg1: i32) -> (i32, i32, i32) {
    %c0_i32 = arith.constant 0 : i32
    %c0_i32_0 = arith.constant 0 : i32
    %c0_i32_1 = arith.constant 0 : i32
    %c0_i32_2 = arith.constant 0 : i32
    return %c0_i32, %c0_i32_0, %c0_i32_1 : i32, i32, i32
  }
  func.func @transform_4(%arg0: i32, %arg1: i32) -> (i32, i32) {
    %c0_i32 = arith.constant 0 : i32
    %c0_i32_0 = arith.constant 0 : i32
    %c0_i32_1 = arith.constant 0 : i32
    return %c0_i32, %c0_i32_0 : i32, i32
  }
  func.func @transform_5(%arg0: i32, %arg1: i32) -> (i32, i32, i32, i32) {
    %c0_i32 = arith.constant 0 : i32
    %c0_i32_0 = arith.constant 0 : i32
    %c0_i32_1 = arith.constant 0 : i32
    return %arg0, %arg1, %c0_i32, %c0_i32_0 : i32, i32, i32, i32
  }
}

</mosaic_0001>

<llo_original>
// kernel: downsample_conv.1
$region0: #{downsample_conv.1}
  #allocation0 [shape = 'u32[]', space=smem, size = 0x4, offset = 0x4, fixed_abs, tag = 'smem constant byte address 0x4 - core index']
  #allocation1 [shape = 'u32[72,128]{1,0:T(1,128)}', space=vmem, size = 0x9000, scoped, tag = 'internal scratch']
  %s0 = inlined_call_operand.vmem [shape: f32[2,8,2,8,8], index: 0, kind: input, shape index: {}, may-alias: {0,1}]
  %s1 = inlined_call_operand.vmem [shape: f32[2,8,2,8,8], index: 1, kind: input, shape index: {}, may-alias: {0,1}]
  %s2 = inlined_call_operand.vmem [shape: f32[3,8,4], index: 2, kind: input, shape index: {}]
  %s3 = inlined_call_operand.vmem [shape: f32[3,4,4], index: 3, kind: input, shape index: {}]
  %s4 = inlined_call_operand.vmem [shape: f32[1,4], index: 4, kind: input, shape index: {}]
  %s5 = inlined_call_operand.vmem [shape: f32[2,8,8,4], index: 5, kind: output, shape index: {}]
  %s6 = sld [smem:[#allocation0]]
  $region53: #{downsample_conv.1} parent=0
    _
  %s8 = ssub.s32 1, %s6
  %s9 = scalar_select 0, %s8, %s6
  loop: start=0, step=1, limit=4
  $region2: #{downsample_conv.1} parent=0 // loop_pre_header
    _
  $region3: #{downsample_conv.1} parent=0 // loop_header
    %s11 = sphi 0, %s15
    %p12 = scmp.ge.s32.totalorder %s11, 4
    %s18 = sphi 0, %s30
    %s19 = sphi 0, %s26
    %s20 = sphi 0, %s18
    %s21 = sphi 0, %s19
    %s22 = sphi 0, %s20
    %s23 = sphi 0, %s21
    %s35 = sphi 0, %s37
    %s38 = sphi 0, %s35
    %s39 = sphi 0, %s38
    %s55 = sphi 0, %s39
    %s71 = sphi 0, %s73
    %s74 = sphi 0, %s71
    %s75 = sphi 0, %s74
    %s91 = sphi 0, %s75
    %s95 = sphi 0, %s95
    %s97 = sphi 0, %s95
    %s98 = sphi 0, %s97
    %s112 = sphi 0, %s98
    %s116 = sphi 0, %s116
    %s118 = sphi 0, %s116
    %s119 = sphi 0, %s118
    %s133 = sphi 0, %s119
    %s137 = sphi 0, %s137
    %s139 = sphi 0, %s137
    %s140 = sphi 0, %s139
    %s154 = sphi 0, %s140
    %s162 = sphi 0, %s164
    %s165 = sphi 0, %s162
    %s166 = sphi 0, %s165
    %s182 = sphi 0, %s166
  $region4: #{downsample_conv.1} parent=0 // loop_header_branch
    %14 = sbr.rel (%p12) target = $region8
  $region5: #{downsample_conv.1} parent=0 // loop_body
    %s16 = ssub.s32 %s11, 1
    %s17 = ssub.s32 %s11, 2
    %s24 = sadd.s32 1, %s19
    %p25 = scmp.ge.s32.totalorder %s24, 1
    %s26 = scalar_select %p25, 0, %s24
    %s27 = sadd.s32 1, %s18
    %s28 = scalar_select %p25, %s27, %s18
    %p29 = scmp.ge.s32.totalorder %s28, 2
    %s30 = scalar_select %p29, 0, %s28
    %s31 = ssub.s32 %s18, %s30
    %s32 = ssub.s32 %s19, %s26
    %s33 = sor.u32 %s31, %s32
    %p34 = scmp.eq.s32.totalorder %s33, 0
    %s36 = sadd.s32 %s35, 1
    %s37 = scalar_select %p34, %s35, %s36
    %p40 = pneg %p34
    %p41 = scmp.eq.s32.totalorder %s11, 1
    %p42 = por %p40, %p41
    %p43 = scmp.ne.s32.totalorder %s35, %s38
    %p44 = scmp.eq.s32.totalorder %s11, 0
    %p45 = por %p43, %p44
    %p46 = scmp.ne.s32.totalorder %s35, %s38
    %p47 = scmp.eq.s32.totalorder %s16, 1
    %p48 = por %p46, %p47
    %p49 = scmp.ne.s32.totalorder %s38, %s39
    %p50 = scmp.eq.s32.totalorder %s16, 0
    %p51 = por %p49, %p50
    %p52 = scmp.ne.s32.totalorder %s38, %s39
    %p53 = scmp.eq.s32.totalorder %s17, 1
    %p54 = por %p52, %p53
    %p56 = scmp.ne.s32.totalorder %s39, %s55
    %p57 = scmp.eq.s32.totalorder %s17, 0
    %p58 = por %p56, %p57
    %s59 = smul.u32 %s19, 8
    %s60 = ssub.s32 %s59, 1
    %p61 = scmp.gt.s32.totalorder %s60, 0
    %s62 = scalar_select %p61, %s60, 0
    %s63 = smul.u32 %s26, 8
    %s64 = ssub.s32 %s63, 1
    %p65 = scmp.gt.s32.totalorder %s64, 0
    %s66 = scalar_select %p65, %s64, 0
    %s67 = ssub.s32 %s18, %s30
    %s68 = ssub.s32 %s62, %s66
    %s69 = sor.u32 %s67, %s68
    %p70 = scmp.eq.s32.totalorder %s69, 0
    %s72 = sadd.s32 %s71, 1
    %s73 = scalar_select %p70, %s71, %s72
    %p76 = pneg %p70
    %p77 = scmp.eq.s32.totalorder %s11, 1
    %p78 = por %p76, %p77
    %p79 = scmp.ne.s32.totalorder %s71, %s74
    %p80 = scmp.eq.s32.totalorder %s11, 0
    %p81 = por %p79, %p80
    %p82 = scmp.ne.s32.totalorder %s71, %s74
    %p83 = scmp.eq.s32.totalorder %s16, 1
    %p84 = por %p82, %p83
    %p85 = scmp.ne.s32.totalorder %s74, %s75
    %p86 = scmp.eq.s32.totalorder %s16, 0
    %p87 = por %p85, %p86
    %p88 = scmp.ne.s32.totalorder %s74, %s75
    %p89 = scmp.eq.s32.totalorder %s17, 1
    %p90 = por %p88, %p89
    %p92 = scmp.ne.s32.totalorder %s75, %s91
    %p93 = scmp.eq.s32.totalorder %s17, 0
    %p94 = por %p92, %p93
    %s96 = sadd.s32 %s95, 1
    %p99 = scmp.eq.s32.totalorder %s11, 1
    %p100 = scmp.ne.s32.totalorder %s95, %s97
    %p101 = scmp.eq.s32.totalorder %s11, 0
    %p102 = por %p100, %p101
    %p103 = scmp.ne.s32.totalorder %s95, %s97
    %p104 = scmp.eq.s32.totalorder %s16, 1
    %p105 = por %p103, %p104
    %p106 = scmp.ne.s32.totalorder %s97, %s98
    %p107 = scmp.eq.s32.totalorder %s16, 0
    %p108 = por %p106, %p107
    %p109 = scmp.ne.s32.totalorder %s97, %s98
    %p110 = scmp.eq.s32.totalorder %s17, 1
    %p111 = por %p109, %p110
    %p113 = scmp.ne.s32.totalorder %s98, %s112
    %p114 = scmp.eq.s32.totalorder %s17, 0
    %p115 = por %p113, %p114
    %s117 = sadd.s32 %s116, 1
    %p120 = scmp.eq.s32.totalorder %s11, 1
    %p121 = scmp.ne.s32.totalorder %s116, %s118
    %p122 = scmp.eq.s32.totalorder %s11, 0
    %p123 = por %p121, %p122
    %p124 = scmp.ne.s32.totalorder %s116, %s118
    %p125 = scmp.eq.s32.totalorder %s16, 1
    %p126 = por %p124, %p125
    %p127 = scmp.ne.s32.totalorder %s118, %s119
    %p128 = scmp.eq.s32.totalorder %s16, 0
    %p129 = por %p127, %p128
    %p130 = scmp.ne.s32.totalorder %s118, %s119
    %p131 = scmp.eq.s32.totalorder %s17, 1
    %p132 = por %p130, %p131
    %p134 = scmp.ne.s32.totalorder %s119, %s133
    %p135 = scmp.eq.s32.totalorder %s17, 0
    %p136 = por %p134, %p135
    %s138 = sadd.s32 %s137, 1
    %p141 = scmp.eq.s32.totalorder %s11, 1
    %p142 = scmp.ne.s32.totalorder %s137, %s139
    %p143 = scmp.eq.s32.totalorder %s11, 0
    %p144 = por %p142, %p143
    %p145 = scmp.ne.s32.totalorder %s137, %s139
    %p146 = scmp.eq.s32.totalorder %s16, 1
    %p147 = por %p145, %p146
    %p148 = scmp.ne.s32.totalorder %s139, %s140
    %p149 = scmp.eq.s32.totalorder %s16, 0
    %p150 = por %p148, %p149
    %p151 = scmp.ne.s32.totalorder %s139, %s140
    %p152 = scmp.eq.s32.totalorder %s17, 1
    %p153 = por %p151, %p152
    %p155 = scmp.ne.s32.totalorder %s140, %s154
    %p156 = scmp.eq.s32.totalorder %s17, 0
    %p157 = por %p155, %p156
    %s158 = ssub.s32 %s18, %s30
    %s159 = ssub.s32 %s19, %s26
    %s160 = sor.u32 %s158, %s159
    %p161 = scmp.eq.s32.totalorder %s160, 0
    %s163 = sadd.s32 %s162, 1
    %s164 = scalar_select %p161, %s162, %s163
    %p167 = pneg %p161
    %p168 = scmp.eq.s32.totalorder %s11, 1
    %p169 = por %p167, %p168
    %p170 = scmp.ne.s32.totalorder %s162, %s165
    %p171 = scmp.eq.s32.totalorder %s11, 0
    %p172 = por %p170, %p171
    %p173 = scmp.ne.s32.totalorder %s162, %s165
    %p174 = scmp.eq.s32.totalorder %s16, 1
    %p175 = por %p173, %p174
    %p176 = scmp.ne.s32.totalorder %s165, %s166
    %p177 = scmp.eq.s32.totalorder %s16, 0
    %p178 = por %p176, %p177
    %p179 = scmp.ne.s32.totalorder %s165, %s166
    %p180 = scmp.eq.s32.totalorder %s17, 1
    %p181 = por %p179, %p180
    %p183 = scmp.ne.s32.totalorder %s166, %s182
    %p184 = scmp.eq.s32.totalorder %s17, 0
    %p185 = por %p183, %p184
    %p186 = scmp.le.s32.totalorder 1, %s11
    %p187 = scmp.lt.s32.totalorder %s11, 3
    %p188 = pnand %p186, %p187
    %p189 = pneg %p188
    // Predicated region
    $region9: #{downsample_conv.1} parent=5 // pred_check
      _
    $region10: #{downsample_conv.1} parent=5 // pred_check_branch
      %191 = sbr.rel (%p188) target = $region12
    $region11: #{downsample_conv.1} parent=5 // pred_region
      %s192 = ssub.s32 %s11, 1
      // Predicated region
      $region13: #{downsample_conv.1} parent=11 // pred_check
        %p193 = pneg %p108
      $region14: #{downsample_conv.1} parent=11 // pred_check_branch
        %195 = sbr.rel (%p193) target = $region16
      $region15: #{downsample_conv.1} parent=11 // pred_region
        _
      $region16: #{downsample_conv.1} parent=11 // pred_fallthru
        _
      // Predicated region
      $region17: #{downsample_conv.1} parent=11 // pred_check
        %p196 = pneg %p129
      $region18: #{downsample_conv.1} parent=11 // pred_check_branch
        %198 = sbr.rel (%p196) target = $region20
      $region19: #{downsample_conv.1} parent=11 // pred_region
        _
      $region20: #{downsample_conv.1} parent=11 // pred_fallthru
        _
      // Predicated region
      $region21: #{downsample_conv.1} parent=11 // pred_check
        %p199 = pneg %p150
      $region22: #{downsample_conv.1} parent=11 // pred_check_branch
        %201 = sbr.rel (%p199) target = $region24
      $region23: #{downsample_conv.1} parent=11 // pred_region
        _
      $region24: #{downsample_conv.1} parent=11 // pred_fallthru
        _
    $region12: #{downsample_conv.1} parent=5 // pred_fallthru
      _
    %p202 = scmp.lt.s32.totalorder %s11, 2
    // Predicated region
    $region25: #{downsample_conv.1} parent=5 // pred_check
      %p203 = pneg %p202
    $region26: #{downsample_conv.1} parent=5 // pred_check_branch
      %205 = sbr.rel (%p203) target = $region28
    $region27: #{downsample_conv.1} parent=5 // pred_region
      // Predicated region
      $region29: #{downsample_conv.1} parent=27 // pred_check
        %p206 = pneg %p45
      $region30: #{downsample_conv.1} parent=27 // pred_check_branch
        %208 = sbr.rel (%p206) target = $region32
      $region31: #{downsample_conv.1} parent=27 // pred_region
        %s209 = smul.u32 8, %s19
        %p210 = scmp.lt.s32.totalorder %s18, 1
        %s211 = scalar_select %p210, %s18, 1
        %p212 = scmp.lt.s32.totalorder %s209, 7
        %s213 = scalar_select %p212, %s209, 7
        %s214 = smul.addr %s213, 2
        %s215 = smul.addr %s211, 16
        %s216 = sadd.s32 %s214, %s215
        %s217 = smul.addr %s216, 8
        %s218 = scalar_lea.vmem %s0, %s217
        %s219 = smul.u32 8, %s19
      $region32: #{downsample_conv.1} parent=27 // pred_fallthru
        _
      // Predicated region
      $region33: #{downsample_conv.1} parent=27 // pred_check
        %p220 = pneg %p81
      $region34: #{downsample_conv.1} parent=27 // pred_check_branch
        %222 = sbr.rel (%p220) target = $region36
      $region35: #{downsample_conv.1} parent=27 // pred_region
        %s223 = smul.u32 %s19, 8
        %s224 = ssub.s32 %s223, 1
        %p225 = scmp.gt.s32.totalorder %s224, 0
        %s226 = scalar_select %p225, %s224, 0
        %p227 = scmp.lt.s32.totalorder %s18, 1
        %s228 = scalar_select %p227, %s18, 1
        %p229 = scmp.lt.s32.totalorder %s226, 7
        %s230 = scalar_select %p229, %s226, 7
        %s231 = smul.addr %s230, 2
        %s232 = smul.addr %s228, 16
        %s233 = sadd.s32 %s231, %s232
        %s234 = smul.addr %s233, 8
        %s235 = scalar_lea.vmem %s1, %s234
        %s236 = smul.u32 %s19, 8
        %s237 = ssub.s32 %s236, 1
        %p238 = scmp.gt.s32.totalorder %s237, 0
        %s239 = scalar_select %p238, %s237, 0
      $region36: #{downsample_conv.1} parent=27 // pred_fallthru
        _
    $region28: #{downsample_conv.1} parent=5 // pred_fallthru
      _
    %p240 = scmp.le.s32.totalorder 1, %s11
    %p241 = scmp.lt.s32.totalorder %s11, 3
    %p242 = pnand %p240, %p241
    %p243 = pneg %p242
    // Predicated region
    $region37: #{downsample_conv.1} parent=5 // pred_check
      _
    $region38: #{downsample_conv.1} parent=5 // pred_check_branch
      %245 = sbr.rel (%p242) target = $region40
    $region39: #{downsample_conv.1} parent=5 // pred_region
      %s246 = ssub.s32 %s11, 1
      %s247 = smul.u32 8, %s21
      %p248 = scmp.lt.s32.totalorder %s20, 1
      %s249 = scalar_select %p248, %s20, 1
      %p250 = scmp.lt.s32.totalorder %s247, 7
      %s251 = scalar_select %p250, %s247, 7
      %s252 = smul.addr %s251, 2
      %s253 = smul.addr %s249, 16
      %s254 = sadd.s32 %s252, %s253
      %s255 = smul.addr %s254, 8
      %s256 = scalar_lea.vmem %s0, %s255
      %p257 = pneg %p51
      %p258 = pneg %p48
      %s259 = smul.u32 %s21, 8
      %s260 = ssub.s32 %s259, 1
      %p261 = scmp.gt.s32.totalorder %s260, 0
      %s262 = scalar_select %p261, %s260, 0
      %p263 = scmp.lt.s32.totalorder %s20, 1
      %s264 = scalar_select %p263, %s20, 1
      %p265 = scmp.lt.s32.totalorder %s262, 7
      %s266 = scalar_select %p265, %s262, 7
      %s267 = smul.addr %s266, 2
      %s268 = smul.addr %s264, 16
      %s269 = sadd.s32 %s267, %s268
      %s270 = smul.addr %s269, 8
      %s271 = scalar_lea.vmem %s1, %s270
      %p272 = pneg %p87
      %p273 = pneg %p84
      %p274 = pneg %p108
      %p275 = pneg %p105
      %p276 = pneg %p129
      %p277 = pneg %p126
      %p278 = pneg %p150
      %p279 = pneg %p147
      %p280 = pneg %p178
      %p281 = pneg %p175
      %s282 = smul.u32 8, %s21
      %p283 = scmp.lt.s32.totalorder %s20, 1
      %s284 = scalar_select %p283, %s20, 1
      %p285 = scmp.lt.s32.totalorder %s282, 7
      %s286 = scalar_select %p285, %s282, 7
      %s287 = smul.addr %s284, 8
      %s288 = sadd.s32 %s286, %s287
      %s289 = smul.addr %s288, 8
      %s290 = scalar_lea.vmem %s5, %s289
      %s291 = smul.u32 8, %s21
      %p292 = scmp.lt.s32.totalorder %s20, 1
      %s293 = scalar_select %p292, %s20, 1
      %p294 = scmp.lt.s32.totalorder %s291, 7
      %s295 = scalar_select %p294, %s291, 7
      %s296 = smul.addr %s295, 2
      %s297 = smul.addr %s293, 16
      %s298 = sadd.s32 %s296, %s297
      %s299 = smul.addr %s298, 8
      %s300 = scalar_lea.vmem %s0, %s299
      %s301 = smul.u32 8, %s21
      %s302 = smul.u32 %s21, 8
      %s303 = ssub.s32 %s302, 1
      %p304 = scmp.gt.s32.totalorder %s303, 0
      %s305 = scalar_select %p304, %s303, 0
      %p306 = scmp.lt.s32.totalorder %s20, 1
      %s307 = scalar_select %p306, %s20, 1
      %p308 = scmp.lt.s32.totalorder %s305, 7
      %s309 = scalar_select %p308, %s305, 7
      %s310 = smul.addr %s309, 2
      %s311 = smul.addr %s307, 16
      %s312 = sadd.s32 %s310, %s311
      %s313 = smul.addr %s312, 8
      %s314 = scalar_lea.vmem %s1, %s313
      %s315 = smul.u32 %s21, 8
      %s316 = ssub.s32 %s315, 1
      %p317 = scmp.gt.s32.totalorder %s316, 0
      %s318 = scalar_select %p317, %s316, 0
      %s319 = smul.u32 8, %s21
      %p320 = scmp.lt.s32.totalorder %s20, 1
      %s321 = scalar_select %p320, %s20, 1
      %p322 = scmp.lt.s32.totalorder %s319, 7
      %s323 = scalar_select %p322, %s319, 7
      %s324 = smul.addr %s321, 8
      %s325 = sadd.s32 %s323, %s324
      %s326 = smul.addr %s325, 8
      %s327 = scalar_lea.vmem %s5, %s326
      %s328 = smul.u32 8, %s21
      %v329 = vld [vmem:[%s300] sm:$0xff]
      %v330 = vld [vmem:[%s300 + $0x8] sm:$0xff]
      %v331 = vld [vmem:[%s300 + $0x10] sm:$0xff]
      %v332 = vld [vmem:[%s300 + $0x18] sm:$0xff]
      %v333 = vld [vmem:[%s300 + $0x20] sm:$0xff]
      %v334 = vld [vmem:[%s300 + $0x28] sm:$0xff]
      %v335 = vld [vmem:[%s300 + $0x30] sm:$0xff]
      %v336 = vld [vmem:[%s300 + $0x38] sm:$0xff]
      %v337 = vld [vmem:[%s300 + $0x40] sm:$0xff]
      %v338 = vld [vmem:[%s300 + $0x48] sm:$0xff]
      %v339 = vld [vmem:[%s300 + $0x50] sm:$0xff]
      %v340 = vld [vmem:[%s300 + $0x58] sm:$0xff]
      %v341 = vld [vmem:[%s300 + $0x60] sm:$0xff]
      %v342 = vld [vmem:[%s300 + $0x68] sm:$0xff]
      %v343 = vld [vmem:[%s300 + $0x70] sm:$0xff]
      %v344 = vld [vmem:[%s300 + $0x78] sm:$0xff]
      %v361 = vrot.slane %v329, 7
      %v362 = vrot.slane %v330, 7
      %v363 = vrot.slane %v331, 7
      %v364 = vrot.slane %v332, 7
      %v365 = vrot.slane %v333, 7
      %v366 = vrot.slane %v334, 7
      %v367 = vrot.slane %v335, 7
      %v368 = vrot.slane %v336, 7
      %v369 = vrot.slane %v337, 7
      %v370 = vrot.slane %v338, 7
      %v371 = vrot.slane %v339, 7
      %v372 = vrot.slane %v340, 7
      %v373 = vrot.slane %v341, 7
      %v374 = vrot.slane %v342, 7
      %v375 = vrot.slane %v343, 7
      %v376 = vrot.slane %v344, 7
      %377 = vrot.lane.b32.xlu0 %v361, 124
      %v378 = vpop.permute.xlu0 %377
      %379 = vrot.lane.b32.xlu0 %v362, 124
      %v380 = vpop.permute.xlu0 %379
      %381 = vrot.lane.b32.xlu0 %v363, 124
      %v382 = vpop.permute.xlu0 %381
      %383 = vrot.lane.b32.xlu0 %v364, 124
      %v384 = vpop.permute.xlu0 %383
      %385 = vrot.lane.b32.xlu0 %v365, 124
      %v386 = vpop.permute.xlu0 %385
      %387 = vrot.lane.b32.xlu0 %v366, 124
      %v388 = vpop.permute.xlu0 %387
      %389 = vrot.lane.b32.xlu0 %v367, 124
      %v390 = vpop.permute.xlu0 %389
      %391 = vrot.lane.b32.xlu0 %v368, 124
      %v392 = vpop.permute.xlu0 %391
      %393 = vrot.lane.b32.xlu0 %v369, 124
      %v394 = vpop.permute.xlu0 %393
      %395 = vrot.lane.b32.xlu0 %v370, 124
      %v396 = vpop.permute.xlu0 %395
      %397 = vrot.lane.b32.xlu0 %v371, 124
      %v398 = vpop.permute.xlu0 %397
      %399 = vrot.lane.b32.xlu0 %v372, 124
      %v400 = vpop.permute.xlu0 %399
      %401 = vrot.lane.b32.xlu0 %v373, 124
      %v402 = vpop.permute.xlu0 %401
      %403 = vrot.lane.b32.xlu0 %v374, 124
      %v404 = vpop.permute.xlu0 %403
      %405 = vrot.lane.b32.xlu0 %v375, 124
      %v406 = vpop.permute.xlu0 %405
      %407 = vrot.lane.b32.xlu0 %v376, 124
      %v408 = vpop.permute.xlu0 %407
      %vm425 = vcmask 1040384
      %v426 = vsel %vm425, 0.0, %v378
      %v427 = vsel %vm425, 0.0, %v380
      %v428 = vsel %vm425, 0.0, %v382
      %v429 = vsel %vm425, 0.0, %v384
      %v430 = vsel %vm425, 0.0, %v386
      %v431 = vsel %vm425, 0.0, %v388
      %v432 = vsel %vm425, 0.0, %v390
      %v433 = vsel %vm425, 0.0, %v392
      %v434 = vsel %vm425, 0.0, %v394
      %v435 = vsel %vm425, 0.0, %v396
      %v436 = vsel %vm425, 0.0, %v398
      %v437 = vsel %vm425, 0.0, %v400
      %v438 = vsel %vm425, 0.0, %v402
      %v439 = vsel %vm425, 0.0, %v404
      %v440 = vsel %vm425, 0.0, %v406
      %v441 = vsel %vm425, 0.0, %v408
      %s442 = scalar_lea.vmem %s2, 8
      %v443 = vld [vmem:[%s442] sm:$0xff]
      %s444 = scalar_lea.vmem %s3, 4
      %v445 = vld [vmem:[%s444] sm:$0xf]
      %vm446 = vcmask 31744
      %v448 = vsel %vm446, %v426, 0
      %v451 = vsel %vm446, %v428, 0
      %v454 = vsel %vm446, %v430, 0
      %v457 = vsel %vm446, %v432, 0
      %v460 = vsel %vm446, %v434, 0
      %v463 = vsel %vm446, %v436, 0
      %v466 = vsel %vm446, %v438, 0
      %v469 = vsel %vm446, %v440, 0
      %vm471 = vcmask 1043456
      %v473 = vsel %vm471, %v445, 0
      %475 = vmatpush.msra.mxu0 0.0
      %476 = vmatpush.msra.mxu0 0.0
      %477 = vmatpush.msra.mxu0 0.0
      %478 = vmatpush.msra.mxu0 0.0
      %479 = vmatpush.msra.mxu0 0.0
      %480 = vmatpush.msra.mxu0 0.0
      %481 = vmatpush.msra.mxu0 0.0
      %482 = vmatpush.msra.mxu0 0.0
      %483 = vmatpush.msra.mxu0 0.0
      %484 = vmatpush.msra.mxu0 0.0
      %485 = vmatpush.msra.mxu0 0.0
      %486 = vmatpush.msra.mxu0 0.0
      %487 = vmatpush.msra.mxu0 0.0
      %488 = vmatpush.msra.mxu0 0.0
      %489 = vmatpush.msra.mxu0 0.0
      %490 = vmatpush.msra.mxu0 %v473
      %491 = vmatmul.f32.gmra.mxu0 %v448
      %v492 = vpop.f32.mrf.mxu0
      %v493 = vadd.f32 0.0, %v492
      %494 = vmatmul.f32.gmra.mxu0 %v451
      %v495 = vpop.f32.mrf.mxu0
      %v496 = vadd.f32 0.0, %v495
      %497 = vmatmul.f32.gmra.mxu0 %v454
      %v498 = vpop.f32.mrf.mxu0
      %v499 = vadd.f32 0.0, %v498
      %500 = vmatmul.f32.gmra.mxu0 %v457
      %v501 = vpop.f32.mrf.mxu0
      %v502 = vadd.f32 0.0, %v501
      %503 = vmatmul.f32.gmra.mxu0 %v460
      %v504 = vpop.f32.mrf.mxu0
      %v505 = vadd.f32 0.0, %v504
      %506 = vmatmul.f32.gmra.mxu0 %v463
      %v507 = vpop.f32.mrf.mxu0
      %v508 = vadd.f32 0.0, %v507
      %509 = vmatmul.f32.gmra.mxu0 %v466
      %v510 = vpop.f32.mrf.mxu0
      %v511 = vadd.f32 0.0, %v510
      %512 = vmatmul.f32.gmra.mxu0 %v469
      %v513 = vpop.f32.mrf.mxu0
      %v514 = vadd.f32 0.0, %v513
      %515 = vdwg.mxu0
      %vm516 = vcmask 64512
      %v517 = vsel %vm516, %v329, 0
      %v519 = vsel %vm516, %v331, 0
      %v521 = vsel %vm516, %v333, 0
      %v523 = vsel %vm516, %v335, 0
      %v525 = vsel %vm516, %v337, 0
      %v527 = vsel %vm516, %v339, 0
      %v529 = vsel %vm516, %v341, 0
      %v531 = vsel %vm516, %v343, 0
      %533 = vmatpush.msra.mxu0 0.0
      %534 = vmatpush.msra.mxu0 0.0
      %535 = vmatpush.msra.mxu0 0.0
      %536 = vmatpush.msra.mxu0 0.0
      %537 = vmatpush.msra.mxu0 0.0
      %538 = vmatpush.msra.mxu0 0.0
      %539 = vmatpush.msra.mxu0 0.0
      %540 = vmatpush.msra.mxu0 0.0
      %541 = vmatpush.msra.mxu0 0.0
      %542 = vmatpush.msra.mxu0 0.0
      %543 = vmatpush.msra.mxu0 0.0
      %544 = vmatpush.msra.mxu0 0.0
      %545 = vmatpush.msra.mxu0 0.0
      %546 = vmatpush.msra.mxu0 0.0
      %547 = vmatpush.msra.mxu0 0.0
      %548 = vmatpush.msra.mxu0 %v443
      %549 = vmatmul.f32.gmra.mxu0 %v517
      %v550 = vpop.f32.mrf.mxu0
      %v551 = vadd.f32 %v493, %v550
      %552 = vmatmul.f32.gmra.mxu0 %v519
      %v553 = vpop.f32.mrf.mxu0
      %v554 = vadd.f32 %v496, %v553
      %555 = vmatmul.f32.gmra.mxu0 %v521
      %v556 = vpop.f32.mrf.mxu0
      %v557 = vadd.f32 %v499, %v556
      %558 = vmatmul.f32.gmra.mxu0 %v523
      %v559 = vpop.f32.mrf.mxu0
      %v560 = vadd.f32 %v502, %v559
      %561 = vmatmul.f32.gmra.mxu0 %v525
      %v562 = vpop.f32.mrf.mxu0
      %v563 = vadd.f32 %v505, %v562
      %564 = vmatmul.f32.gmra.mxu0 %v527
      %v565 = vpop.f32.mrf.mxu0
      %v566 = vadd.f32 %v508, %v565
      %567 = vmatmul.f32.gmra.mxu0 %v529
      %v568 = vpop.f32.mrf.mxu0
      %v569 = vadd.f32 %v511, %v568
      %570 = vmatmul.f32.gmra.mxu0 %v531
      %v571 = vpop.f32.mrf.mxu0
      %v572 = vadd.f32 %v514, %v571
      %573 = vdwg.mxu0
      %s574 = scalar_lea.vmem %s2, 16
      %v575 = vld [vmem:[%s574] sm:$0xff]
      %v576 = vsel %vm516, %v330, 0
      %v578 = vsel %vm516, %v332, 0
      %v580 = vsel %vm516, %v334, 0
      %v582 = vsel %vm516, %v336, 0
      %v584 = vsel %vm516, %v338, 0
      %v586 = vsel %vm516, %v340, 0
      %v588 = vsel %vm516, %v342, 0
      %v590 = vsel %vm516, %v344, 0
      %592 = vmatpush.msra.mxu0 0.0
      %593 = vmatpush.msra.mxu0 0.0
      %594 = vmatpush.msra.mxu0 0.0
      %595 = vmatpush.msra.mxu0 0.0
      %596 = vmatpush.msra.mxu0 0.0
      %597 = vmatpush.msra.mxu0 0.0
      %598 = vmatpush.msra.mxu0 0.0
      %599 = vmatpush.msra.mxu0 0.0
      %600 = vmatpush.msra.mxu0 0.0
      %601 = vmatpush.msra.mxu0 0.0
      %602 = vmatpush.msra.mxu0 0.0
      %603 = vmatpush.msra.mxu0 0.0
      %604 = vmatpush.msra.mxu0 0.0
      %605 = vmatpush.msra.mxu0 0.0
      %606 = vmatpush.msra.mxu0 0.0
      %607 = vmatpush.msra.mxu0 %v575
      %608 = vmatmul.f32.gmra.mxu0 %v576
      %v609 = vpop.f32.mrf.mxu0
      %v610 = vadd.f32 0.0, %v609
      %611 = vmatmul.f32.gmra.mxu0 %v578
      %v612 = vpop.f32.mrf.mxu0
      %v613 = vadd.f32 0.0, %v612
      %614 = vmatmul.f32.gmra.mxu0 %v580
      %v615 = vpop.f32.mrf.mxu0
      %v616 = vadd.f32 0.0, %v615
      %617 = vmatmul.f32.gmra.mxu0 %v582
      %v618 = vpop.f32.mrf.mxu0
      %v619 = vadd.f32 0.0, %v618
      %620 = vmatmul.f32.gmra.mxu0 %v584
      %v621 = vpop.f32.mrf.mxu0
      %v622 = vadd.f32 0.0, %v621
      %623 = vmatmul.f32.gmra.mxu0 %v586
      %v624 = vpop.f32.mrf.mxu0
      %v625 = vadd.f32 0.0, %v624
      %626 = vmatmul.f32.gmra.mxu0 %v588
      %v627 = vpop.f32.mrf.mxu0
      %v628 = vadd.f32 0.0, %v627
      %629 = vmatmul.f32.gmra.mxu0 %v590
      %v630 = vpop.f32.mrf.mxu0
      %v631 = vadd.f32 0.0, %v630
      %632 = vdwg.mxu0
      %v633 = vadd.f32 %v551, %v610
      %v634 = vadd.f32 %v554, %v613
      %v635 = vadd.f32 %v557, %v616
      %v636 = vadd.f32 %v560, %v619
      %v637 = vadd.f32 %v563, %v622
      %v638 = vadd.f32 %v566, %v625
      %v639 = vadd.f32 %v569, %v628
      %v640 = vadd.f32 %v572, %v631
      %s641 = scalar_lea.vmem %s3, 8
      %v642 = vld [vmem:[%s641] sm:$0xf]
      %v644 = vsel %vm446, %v427, 0
      %v647 = vsel %vm446, %v429, 0
      %v650 = vsel %vm446, %v431, 0
      %v653 = vsel %vm446, %v433, 0
      %v656 = vsel %vm446, %v435, 0
      %v659 = vsel %vm446, %v437, 0
      %v662 = vsel %vm446, %v439, 0
      %v665 = vsel %vm446, %v441, 0
      %v668 = vsel %vm471, %v642, 0
      %670 = vmatpush.msra.mxu0 0.0
      %671 = vmatpush.msra.mxu0 0.0
      %672 = vmatpush.msra.mxu0 0.0
      %673 = vmatpush.msra.mxu0 0.0
      %674 = vmatpush.msra.mxu0 0.0
      %675 = vmatpush.msra.mxu0 0.0
      %676 = vmatpush.msra.mxu0 0.0
      %677 = vmatpush.msra.mxu0 0.0
      %678 = vmatpush.msra.mxu0 0.0
      %679 = vmatpush.msra.mxu0 0.0
      %680 = vmatpush.msra.mxu0 0.0
      %681 = vmatpush.msra.mxu0 0.0
      %682 = vmatpush.msra.mxu0 0.0
      %683 = vmatpush.msra.mxu0 0.0
      %684 = vmatpush.msra.mxu0 0.0
      %685 = vmatpush.msra.mxu0 %v668
      %686 = vmatmul.f32.gmra.mxu0 %v644
      %v687 = vpop.f32.mrf.mxu0
      %v688 = vadd.f32 0.0, %v687
      %689 = vmatmul.f32.gmra.mxu0 %v647
      %v690 = vpop.f32.mrf.mxu0
      %v691 = vadd.f32 0.0, %v690
      %692 = vmatmul.f32.gmra.mxu0 %v650
      %v693 = vpop.f32.mrf.mxu0
      %v694 = vadd.f32 0.0, %v693
      %695 = vmatmul.f32.gmra.mxu0 %v653
      %v696 = vpop.f32.mrf.mxu0
      %v697 = vadd.f32 0.0, %v696
      %698 = vmatmul.f32.gmra.mxu0 %v656
      %v699 = vpop.f32.mrf.mxu0
      %v700 = vadd.f32 0.0, %v699
      %701 = vmatmul.f32.gmra.mxu0 %v659
      %v702 = vpop.f32.mrf.mxu0
      %v703 = vadd.f32 0.0, %v702
      %704 = vmatmul.f32.gmra.mxu0 %v662
      %v705 = vpop.f32.mrf.mxu0
      %v706 = vadd.f32 0.0, %v705
      %707 = vmatmul.f32.gmra.mxu0 %v665
      %v708 = vpop.f32.mrf.mxu0
      %v709 = vadd.f32 0.0, %v708
      %710 = vdwg.mxu0
      %v711 = vadd.f32 %v633, %v688
      %v712 = vadd.f32 %v634, %v691
      %v713 = vadd.f32 %v635, %v694
      %v714 = vadd.f32 %v636, %v697
      %v715 = vadd.f32 %v637, %v700
      %v716 = vadd.f32 %v638, %v703
      %v717 = vadd.f32 %v639, %v706
      %v718 = vadd.f32 %v640, %v709
      %v719 = vld [vmem:[%s4] sm:$0x1]
      %v720 = vld [vmem:[%s2] sm:$0xff]
      %v721 = vld [vmem:[%s3] sm:$0xf]
      %v723 = vsel %vm471, %v721, 0
      %725 = vmatpush.msra.mxu0 0.0
      %726 = vmatpush.msra.mxu0 0.0
      %727 = vmatpush.msra.mxu0 0.0
      %728 = vmatpush.msra.mxu0 0.0
      %729 = vmatpush.msra.mxu0 0.0
      %730 = vmatpush.msra.mxu0 0.0
      %731 = vmatpush.msra.mxu0 0.0
      %732 = vmatpush.msra.mxu0 0.0
      %733 = vmatpush.msra.mxu0 0.0
      %734 = vmatpush.msra.mxu0 0.0
      %735 = vmatpush.msra.mxu0 0.0
      %736 = vmatpush.msra.mxu0 0.0
      %737 = vmatpush.msra.mxu0 0.0
      %738 = vmatpush.msra.mxu0 0.0
      %739 = vmatpush.msra.mxu0 0.0
      %740 = vmatpush.msra.mxu0 %v723
      %741 = vmatmul.f32.gmra.mxu0 %v644
      %v742 = vpop.f32.mrf.mxu0
      %v743 = vadd.f32 0.0, %v742
      %744 = vmatmul.f32.gmra.mxu0 %v647
      %v745 = vpop.f32.mrf.mxu0
      %v746 = vadd.f32 0.0, %v745
      %747 = vmatmul.f32.gmra.mxu0 %v650
      %v748 = vpop.f32.mrf.mxu0
      %v749 = vadd.f32 0.0, %v748
      %750 = vmatmul.f32.gmra.mxu0 %v653
      %v751 = vpop.f32.mrf.mxu0
      %v752 = vadd.f32 0.0, %v751
      %753 = vmatmul.f32.gmra.mxu0 %v656
      %v754 = vpop.f32.mrf.mxu0
      %v755 = vadd.f32 0.0, %v754
      %756 = vmatmul.f32.gmra.mxu0 %v659
      %v757 = vpop.f32.mrf.mxu0
      %v758 = vadd.f32 0.0, %v757
      %759 = vmatmul.f32.gmra.mxu0 %v662
      %v760 = vpop.f32.mrf.mxu0
      %v761 = vadd.f32 0.0, %v760
      %762 = vdwg.mxu0
      %763 = vmatpush.msra.mxu0 0.0
      %764 = vmatpush.msra.mxu0 0.0
      %765 = vmatpush.msra.mxu0 0.0
      %766 = vmatpush.msra.mxu0 0.0
      %767 = vmatpush.msra.mxu0 0.0
      %768 = vmatpush.msra.mxu0 0.0
      %769 = vmatpush.msra.mxu0 0.0
      %770 = vmatpush.msra.mxu0 0.0
      %771 = vmatpush.msra.mxu0 0.0
      %772 = vmatpush.msra.mxu0 0.0
      %773 = vmatpush.msra.mxu0 0.0
      %774 = vmatpush.msra.mxu0 0.0
      %775 = vmatpush.msra.mxu0 0.0
      %776 = vmatpush.msra.mxu0 0.0
      %777 = vmatpush.msra.mxu0 0.0
      %778 = vmatpush.msra.mxu0 %v720
      %779 = vmatmul.f32.gmra.mxu0 %v576
      %v780 = vpop.f32.mrf.mxu0
      %v781 = vadd.f32 %v743, %v780
      %782 = vmatmul.f32.gmra.mxu0 %v578
      %v783 = vpop.f32.mrf.mxu0
      %v784 = vadd.f32 %v746, %v783
      %785 = vmatmul.f32.gmra.mxu0 %v580
      %v786 = vpop.f32.mrf.mxu0
      %v787 = vadd.f32 %v749, %v786
      %788 = vmatmul.f32.gmra.mxu0 %v582
      %v789 = vpop.f32.mrf.mxu0
      %v790 = vadd.f32 %v752, %v789
      %791 = vmatmul.f32.gmra.mxu0 %v584
      %v792 = vpop.f32.mrf.mxu0
      %v793 = vadd.f32 %v755, %v792
      %794 = vmatmul.f32.gmra.mxu0 %v586
      %v795 = vpop.f32.mrf.mxu0
      %v796 = vadd.f32 %v758, %v795
      %797 = vmatmul.f32.gmra.mxu0 %v588
      %v798 = vpop.f32.mrf.mxu0
      %v799 = vadd.f32 %v761, %v798
      %800 = vdwg.mxu0
      %v801 = vadd.f32 %v712, %v781
      %v802 = vadd.f32 %v713, %v784
      %v803 = vadd.f32 %v714, %v787
      %v804 = vadd.f32 %v715, %v790
      %v805 = vadd.f32 %v716, %v793
      %v806 = vadd.f32 %v717, %v796
      %v807 = vadd.f32 %v718, %v799
      %v809 = vperm.slane %v719, 0
      %v811 = vadd.f32 %v801, %v809
      %v812 = vadd.f32 %v802, %v809
      %v813 = vadd.f32 %v803, %v809
      %v814 = vadd.f32 %v804, %v809
      %v815 = vadd.f32 %v805, %v809
      %v816 = vadd.f32 %v806, %v809
      %v817 = vadd.f32 %v807, %v809
      %s818 = scalar_lea.vmem %s327, 8
      %819 = vst.msk [vmem:[%s818] sm:$0xff] %vm446, %v811
      %820 = vst.msk [vmem:[%s818 + $0x8] sm:$0xff] %vm446, %v812
      %821 = vst.msk [vmem:[%s818 + $0x10] sm:$0xff] %vm446, %v813
      %822 = vst.msk [vmem:[%s818 + $0x18] sm:$0xff] %vm446, %v814
      %823 = vst.msk [vmem:[%s818 + $0x20] sm:$0xff] %vm446, %v815
      %824 = vst.msk [vmem:[%s818 + $0x28] sm:$0xff] %vm446, %v816
      %825 = vst.msk [vmem:[%s818 + $0x30] sm:$0xff] %vm446, %v817
      %s826 = scalar_lea.vmem %s314, 8
      %v827 = vld [vmem:[%s826] sm:$0xff]
      %v829 = vrot.slane %v827, 7
      %830 = vrot.lane.b32.xlu0 %v829, 124
      %v831 = vpop.permute.xlu0 %830
      %v833 = vsel %vm425, 0.0, %v831
      %p834 = scmp.gt.s32.totalorder %s21, 0
      %s835 = scalar_select %p834, 1, 0
      %s836 = scvt.s32.f32 %s835
      %v837 = vld [vmem:[%s2] sm:$0xff]
      %v838 = vld [vmem:[%s3] sm:$0xf]
      %v840 = vsel %vm446, %v833, 0
      %v843 = vsel %vm471, %v838, 0
      %845 = vmatpush.msra.mxu0 0.0
      %846 = vmatpush.msra.mxu0 0.0
      %847 = vmatpush.msra.mxu0 0.0
      %848 = vmatpush.msra.mxu0 0.0
      %849 = vmatpush.msra.mxu0 0.0
      %850 = vmatpush.msra.mxu0 0.0
      %851 = vmatpush.msra.mxu0 0.0
      %852 = vmatpush.msra.mxu0 0.0
      %853 = vmatpush.msra.mxu0 0.0
      %854 = vmatpush.msra.mxu0 0.0
      %855 = vmatpush.msra.mxu0 0.0
      %856 = vmatpush.msra.mxu0 0.0
      %857 = vmatpush.msra.mxu0 0.0
      %858 = vmatpush.msra.mxu0 0.0
      %859 = vmatpush.msra.mxu0 0.0
      %860 = vmatpush.msra.mxu0 %v843
      %861 = vmatmul.f32.gmra.mxu0 %v840
      %v862 = vpop.f32.mrf.mxu0
      %v863 = vadd.f32 0.0, %v862
      %864 = vdwg.mxu0
      %v865 = vsel %vm516, %v827, 0
      %867 = vmatpush.msra.mxu0 0.0
      %868 = vmatpush.msra.mxu0 0.0
      %869 = vmatpush.msra.mxu0 0.0
      %870 = vmatpush.msra.mxu0 0.0
      %871 = vmatpush.msra.mxu0 0.0
      %872 = vmatpush.msra.mxu0 0.0
      %873 = vmatpush.msra.mxu0 0.0
      %874 = vmatpush.msra.mxu0 0.0
      %875 = vmatpush.msra.mxu0 0.0
      %876 = vmatpush.msra.mxu0 0.0
      %877 = vmatpush.msra.mxu0 0.0
      %878 = vmatpush.msra.mxu0 0.0
      %879 = vmatpush.msra.mxu0 0.0
      %880 = vmatpush.msra.mxu0 0.0
      %881 = vmatpush.msra.mxu0 0.0
      %882 = vmatpush.msra.mxu0 %v837
      %883 = vmatmul.f32.gmra.mxu0 %v865
      %v884 = vpop.f32.mrf.mxu0
      %v885 = vadd.f32 %v863, %v884
      %886 = vdwg.mxu0
      %v887 = vstv %s836
      %v888 = vmul.f32 %v885, %v887
      %v889 = vadd.f32 %v711, %v888
      %v890 = vadd.f32 %v889, %v809
      %891 = vst.msk [vmem:[%s327] sm:$0xff] %vm446, %v890
      %s892 = smul.u32 8, %s21
      %p893 = scmp.lt.s32.totalorder %s20, 1
      %s894 = scalar_select %p893, %s20, 1
      %p895 = scmp.lt.s32.totalorder %s892, 7
      %s896 = scalar_select %p895, %s892, 7
      %s897 = smul.addr %s894, 8
      %s898 = sadd.s32 %s896, %s897
      %s899 = smul.addr %s898, 8
      %s900 = scalar_lea.vmem %s5, %s899
      // Predicated region
      $region41: #{downsample_conv.1} parent=39 // pred_check
        %p901 = pneg %p175
      $region42: #{downsample_conv.1} parent=39 // pred_check_branch
        %903 = sbr.rel (%p901) target = $region44
      $region43: #{downsample_conv.1} parent=39 // pred_region
        %s904 = smul.u32 8, %s21
      $region44: #{downsample_conv.1} parent=39 // pred_fallthru
        _
    $region40: #{downsample_conv.1} parent=5 // pred_fallthru
      _
    %p905 = scmp.le.s32.totalorder 2, %s11
    // Predicated region
    $region45: #{downsample_conv.1} parent=5 // pred_check
      %p906 = pneg %p905
    $region46: #{downsample_conv.1} parent=5 // pred_check_branch
      %908 = sbr.rel (%p906) target = $region48
    $region47: #{downsample_conv.1} parent=5 // pred_region
      %s909 = ssub.s32 %s11, 2
      // Predicated region
      $region49: #{downsample_conv.1} parent=47 // pred_check
        %p910 = pneg %p181
      $region50: #{downsample_conv.1} parent=47 // pred_check_branch
        %912 = sbr.rel (%p910) target = $region52
      $region51: #{downsample_conv.1} parent=47 // pred_region
        %s913 = smul.u32 8, %s23
        %p914 = scmp.lt.s32.totalorder %s22, 1
        %s915 = scalar_select %p914, %s22, 1
        %p916 = scmp.lt.s32.totalorder %s913, 7
        %s917 = scalar_select %p916, %s913, 7
        %s918 = smul.addr %s915, 8
        %s919 = sadd.s32 %s917, %s918
        %s920 = smul.addr %s919, 8
        %s921 = scalar_lea.vmem %s5, %s920
      $region52: #{downsample_conv.1} parent=47 // pred_fallthru
        _
    $region48: #{downsample_conv.1} parent=5 // pred_fallthru
      _
  $region6: #{downsample_conv.1} parent=0 // loop_footer
    %s15 = sadd.s32 1, %s11
  $region7: #{downsample_conv.1} parent=0 // loop_footer_branch
    %10 = sbr.rel target = $region3
  $region8: #{downsample_conv.1} parent=0 // loop_exit
    _

</llo_original>
